<compile_context>
chip_gen: v7x
topology: tpu7x:2x2x1
jax: 0.10.0
libtpu: 0.0.40
codegen_flags: <defaults>
</compile_context>

<pallas_src>
import functools

import jax
import jax.numpy as jnp
from jax.experimental import pallas as pl
from jax.experimental.pallas import tpu as pltpu

_NEG = -1e30  # finite "-inf" mask for padded bank columns (avoids inf-inf NaNs)


def _cdiv(a, b):
    return -(-a // b)


def _round_up(x, m):
    return _cdiv(x, m) * m


def _vmem_capacity_bytes():
    """Physical per-core VMEM, with conservative fallbacks."""
    try:
        info = pltpu.get_tpu_info()
        cap = getattr(info, "vmem_capacity_bytes", None)
        if cap:
            return int(cap)
    except Exception:
        pass
    try:
        kind = jax.devices()[0].device_kind.lower()
        if any(t in kind for t in ("v4", "v5", "v6")):
            return 128 * 1024 * 1024
    except Exception:
        pass
    return 64 * 1024 * 1024  # v7x-safe default (64 MiB per TensorCore)


def _cluster_ce_kernel(x_ref, ft_ref, tgt_ref, lse_ref, tl_ref,
                       m_sc, l_sc, t_sc,
                       *, n_total, tn, tiles_per_split):
    s = pl.program_id(0)
    n = pl.program_id(2)
    n_last = pl.num_programs(2) - 1
    g = s * tiles_per_split + n            # global bank-tile index

    @pl.when(n == 0)
    def _init():
        m_sc[...] = jnp.full_like(m_sc, _NEG)
        l_sc[...] = jnp.zeros_like(l_sc)
        t_sc[...] = jnp.zeros_like(t_sc)

    # (TB, D) bf16 @ (D, TN) bf16 -> (TB, TN) f32 on the MXU, N on lanes.
    logits = jnp.dot(x_ref[...], ft_ref[...],
                     preferred_element_type=jnp.float32)

    # --- target-logit gather: local one-hot against (target - tile offset) ---
    lane = jax.lax.broadcasted_iota(jnp.int32, logits.shape, 1)
    hit = lane == (tgt_ref[...] - g * tn)          # padded targets are -1 -> never hit
    t_sc[...] += jnp.sum(jnp.where(hit, logits, 0.0), axis=-1, keepdims=True)

    # --- mask padded bank columns (only trailing tiles ever carry padding) ---
    limit = n_total - g * tn                        # scalar
    logits = jnp.where(lane < limit, logits, _NEG)

    # --- online (flash-style) log-sum-exp over this split's bank tiles ---
    m_prev = m_sc[...]
    m_new = jnp.maximum(m_prev, jnp.max(logits, axis=-1, keepdims=True))
    l_sc[...] = (jnp.exp(m_prev - m_new) * l_sc[...]
                 + jnp.sum(jnp.exp(logits - m_new), axis=-1, keepdims=True))
    m_sc[...] = m_new

    # --- finalize this (split, B-tile): emit partial lse and target logit ---
    @pl.when(n == n_last)
    def _fin():
        lse_ref[...] = (m_sc[...] + jnp.log(l_sc[...]))[None]   # (1, TB, 1)
        tl_ref[...] = t_sc[...][None]


def cluster_memory_loss(inputs, targets, features, temp=0.05):
    """Pallas implementation of ClusterMemory.forward (loss only)."""
    B, D = inputs.shape
    N, D2 = features.shape
    assert D == D2
    inv_temp = 1.0 / float(temp)

    # --- wrapper-side normalize (F.normalize eps=1e-12), 1/temp fold, bf16 ---
    x = inputs.astype(jnp.float32)
    sq = jnp.sum(x * x, axis=-1, keepdims=True)
    xs = (x * (jax.lax.rsqrt(jnp.maximum(sq, 1e-24)) * inv_temp)).astype(jnp.bfloat16)

    # --- B tiling (TB up to 512 for arithmetic intensity; one tile typical) ---
    TB = min(_round_up(B, 16), 512)
    B_pad = _round_up(B, TB)

    # --- generation-aware VMEM budget and bank tile (TN) sizing ---
    phys = _vmem_capacity_bytes()
    vmem_limit = min(phys * 3 // 4, 100 * 1024 * 1024)   # ~96 MiB v5e/v6e, 48 MiB v7x
    budget = vmem_limit - 4 * 1024 * 1024                # Mosaic internals headroom
    fixed = (2 * TB * D * 2        # x bf16 double-buffer
             + 2 * TB * 4          # targets double-buffer
             + 3 * TB * 4          # m/l/t scratch
             + 4 * TB * 4)         # two thin outputs, double-buffered
    per_col = (2 * D * 2           # bank bf16 double-buffer
               + 6 * TB * 4)       # logits + elementwise f32/i32 temporaries
    TN_max = max(128, ((budget - fixed) // per_col) // 128 * 128)
    TN_max = min(TN_max, _round_up(N, 128))

    # --- split the bank over S "parallel" chunks (2nd TensorCore on v7x) ---
    tiles_min = _cdiv(N, TN_max)
    S = 2 if tiles_min >= 2 else 1
    k = _cdiv(tiles_min, S)                       # bank tiles per split
    TN = _round_up(_cdiv(N, S * k), 128)          # re-balance to minimize padding
    N_pad = S * k * TN

    # --- pad & lay out operands: bank pre-transposed (D, N_pad) in bf16 ---
    xs_p = jnp.pad(xs, ((0, B_pad - B), (0, 0)))
    tgt_p = jnp.pad(targets.astype(jnp.int32).reshape(B, 1),
                    ((0, B_pad - B), (0, 0)), constant_values=-1)
    feat_t = jnp.pad(features.astype(jnp.bfloat16).T, ((0, 0), (0, N_pad - N)))

    kernel = functools.partial(_cluster_ce_kernel,
                               n_total=N, tn=TN, tiles_per_split=k)

    lse_p, t_p = pl.pallas_call(
        kernel,
        out_shape=(jax.ShapeDtypeStruct((S, B_pad, 1), jnp.float32),
                   jax.ShapeDtypeStruct((S, B_pad, 1), jnp.float32)),
        grid_spec=pltpu.PrefetchScalarGridSpec(
            num_scalar_prefetch=0,
            grid=(S, B_pad // TB, k),
            in_specs=[
                pl.BlockSpec((TB, D), lambda s, b, n: (b, 0)),          # activations
                pl.BlockSpec((D, TN), lambda s, b, n: (0, s * k + n)),  # bank, streamed
                pl.BlockSpec((TB, 1), lambda s, b, n: (b, 0)),          # targets
            ],
            out_specs=[
                pl.BlockSpec((1, TB, 1), lambda s, b, n: (s, b, 0)),    # partial lse
                pl.BlockSpec((1, TB, 1), lambda s, b, n: (s, b, 0)),    # partial tgt logit
            ],
            scratch_shapes=[pltpu.VMEM((TB, 1), jnp.float32)] * 3,      # m, l, t
        ),
        compiler_params=pltpu.CompilerParams(
            dimension_semantics=("parallel", "parallel", "arbitrary"),
            vmem_limit_bytes=int(vmem_limit)),
    )(xs_p, feat_t, tgt_p)

    # --- merge the per-split partials (2-way LSE) and reduce the loss ---
    lse = jax.scipy.special.logsumexp(lse_p[:, :, 0], axis=0)   # (B_pad,)
    tgt_logit = jnp.sum(t_p[:, :, 0], axis=0)                   # (B_pad,)
    per_sample = lse - tgt_logit
    return jnp.sum(per_sample[:B]) / B


def _reference_loss_f32(inputs, targets, features, temp=0.05):
    x = inputs.astype(jnp.float32)
    x_n = x / jnp.maximum(jnp.linalg.norm(x, axis=1, keepdims=True), 1e-12)
    logits = (x_n @ features.astype(jnp.float32).T) / temp
    logz = jax.scipy.special.logsumexp(logits, axis=-1)
    tgt_logit = jnp.take_along_axis(logits, targets[:, None], axis=-1)[:, 0]
    return jnp.mean(logz - tgt_logit)


def _reference_loss_bf16(inputs, targets, features, temp=0.05):
    # Mirrors the kernel's numerics: bf16 MXU operands, f32 accumulation.
    x = inputs.astype(jnp.float32)
    x_n = x / jnp.maximum(jnp.linalg.norm(x, axis=1, keepdims=True), 1e-12)
    xs = (x_n / temp).astype(jnp.bfloat16)
    logits = jnp.dot(xs, features.astype(jnp.bfloat16).T,
                     preferred_element_type=jnp.float32)
    logz = jax.scipy.special.logsumexp(logits, axis=-1)
    tgt_logit = jnp.take_along_axis(logits, targets[:, None], axis=-1)[:, 0]
    return jnp.mean(logz - tgt_logit)


if __name__ == "__main__":
    # Small synthetic shapes consistent with the module:
    #   num_features (D) = 32, num_samples (N) = 16, batch (B) = 8
    B, D, N = 8, 32, 16
    temp = 0.05

    key = jax.random.PRNGKey(0)
    k_x, k_f, k_t = jax.random.split(key, 3)

    inputs = jax.random.normal(k_x, (B, D), dtype=jnp.float32)
    targets = jax.random.randint(k_t, (B,), 0, N, dtype=jnp.int32)

    # The module registers a zero buffer; initialize it deterministically with
    # unit-norm rows so the forward is non-degenerate.
    feats = jax.random.normal(k_f, (N, D), dtype=jnp.float32)
    feats = feats / jnp.linalg.norm(feats, axis=1, keepdims=True)

    # TODO(synk): CM/CM_Hard backward-side memory-bank momentum update has no
    # role in the forward pass and is not implemented here.

    loss = cluster_memory_loss(inputs, targets, feats, temp=temp)
    loss = jax.block_until_ready(loss)

    ref_bf16 = _reference_loss_bf16(inputs, targets, feats, temp=temp)
    ref_f32 = _reference_loss_f32(inputs, targets, feats, temp=temp)
    assert jnp.allclose(loss, ref_bf16, rtol=1e-3, atol=1e-2), (loss, ref_bf16)
    assert jnp.allclose(loss, ref_f32, rtol=0.0, atol=1e-1), (loss, ref_f32)

    print("KERNEL_OK")
</pallas_src>

<mosaic_0001>
module attributes {stable_mosaic.version = 11 : i64} {
  func.func @_cluster_ce_kernel(%arg0: i32, %arg1: i32, %arg2: i32, %arg3: memref<16x32xbf16, #tpu.memory_space<vmem>>, %arg4: memref<32x128xbf16, #tpu.memory_space<vmem>>, %arg5: memref<16x1xi32, #tpu.memory_space<vmem>>, %arg6: memref<1x16x1xf32, #tpu.memory_space<vmem>>, %arg7: memref<1x16x1xf32, #tpu.memory_space<vmem>>, %arg8: memref<16x1xf32, #tpu.memory_space<vmem>>, %arg9: memref<16x1xf32, #tpu.memory_space<vmem>>, %arg10: memref<16x1xf32, #tpu.memory_space<vmem>>) attributes {dimension_semantics = [#tpu.dimension_semantics<parallel>, #tpu.dimension_semantics<parallel>, #tpu.dimension_semantics<arbitrary>], iteration_bounds = array<i64: 1, 1, 1>, scalar_prefetch = 0 : i64, scratch_operands = 3 : i64, tpu.core_type = #tpu.core_type<tc>, window_params = [{transform_indices = @transform_0, window_bounds = array<i64: 16, 32>}, {transform_indices = @transform_1, window_bounds = array<i64: 32, 128>}, {transform_indices = @transform_2, window_bounds = array<i64: 16, 1>}, {transform_indices = @transform_3, window_bounds = array<i64: 1, 16, 1>}, {transform_indices = @transform_4, window_bounds = array<i64: 1, 16, 1>}]} {
    %c1_i32 = arith.constant 1 : i32
    %0 = arith.muli %arg0, %c1_i32 : i32
    %1 = arith.addi %0, %arg2 : i32
    %c0_i32 = arith.constant 0 : i32
    %2 = arith.cmpi eq, %arg2, %c0_i32 : i32
    %3 = arith.extui %2 : i1 to i32
    %c0_i32_0 = arith.constant 0 : i32
    %4 = arith.cmpi ne, %3, %c0_i32_0 : i32
    scf.if %4 {
      %cst_26 = arith.constant -1.000000e+30 : f32
      %47 = vector.broadcast %cst_26 : f32 to vector<16x1xf32>
      %c0_27 = arith.constant 0 : index
      %c0_28 = arith.constant 0 : index
      %48 = vector.load %arg8[%c0_27, %c0_28] : memref<16x1xf32, #tpu.memory_space<vmem>>, vector<16x1xf32>
      tpu.vector_store %arg8[%c0_27, %c0_28], %47 {strides = array<i32>} : memref<16x1xf32, #tpu.memory_space<vmem>>, vector<16x1xf32>,
      %cst_29 = arith.constant 0.000000e+00 : f32
      %49 = vector.broadcast %cst_29 : f32 to vector<16x1xf32>
      %c0_30 = arith.constant 0 : index
      %c0_31 = arith.constant 0 : index
      %50 = vector.load %arg9[%c0_30, %c0_31] : memref<16x1xf32, #tpu.memory_space<vmem>>, vector<16x1xf32>
      tpu.vector_store %arg9[%c0_30, %c0_31], %49 {strides = array<i32>} : memref<16x1xf32, #tpu.memory_space<vmem>>, vector<16x1xf32>,
      %cst_32 = arith.constant 0.000000e+00 : f32
      %51 = vector.broadcast %cst_32 : f32 to vector<16x1xf32>
      %c0_33 = arith.constant 0 : index
      %c0_34 = arith.constant 0 : index
      %52 = vector.load %arg10[%c0_33, %c0_34] : memref<16x1xf32, #tpu.memory_space<vmem>>, vector<16x1xf32>
      tpu.vector_store %arg10[%c0_33, %c0_34], %51 {strides = array<i32>} : memref<16x1xf32, #tpu.memory_space<vmem>>, vector<16x1xf32>,
    } else {
    }
    %c0 = arith.constant 0 : index
    %c0_1 = arith.constant 0 : index
    %5 = vector.load %arg3[%c0, %c0_1] : memref<16x32xbf16, #tpu.memory_space<vmem>>, vector<16x32xbf16>
    %c0_2 = arith.constant 0 : index
    %c0_3 = arith.constant 0 : index
    %6 = vector.load %arg4[%c0_2, %c0_3] : memref<32x128xbf16, #tpu.memory_space<vmem>>, vector<32x128xbf16>
    %cst = arith.constant dense<0.000000e+00> : vector<16x128xf32>
    %7 = tpu.matmul %5, %6, %cst {dimension_numbers = #tpu.dot_dimension_numbers<[1], [0], [0], [1], [0, 0, 1, 1], [], []>} : vector<16x32xbf16>, vector<32x128xbf16>, vector<16x128xf32> -> vector<16x128xf32>
    %8 = tpu.iota {dimensions = array<i32: 1>} : vector<16x128xi32>
    %c0_4 = arith.constant 0 : index
    %c0_5 = arith.constant 0 : index
    %9 = vector.load %arg5[%c0_4, %c0_5] : memref<16x1xi32, #tpu.memory_space<vmem>>, vector<16x1xi32>
    %c128_i32 = arith.constant 128 : i32
    %10 = arith.muli %1, %c128_i32 : i32
    %11 = vector.broadcast %10 : i32 to vector<16x1xi32>
    %12 = arith.subi %9, %11 : vector<16x1xi32>
    %13 = vector.broadcast %12 : vector<16x1xi32> to vector<16x128xi32>
    %14 = arith.cmpi eq, %8, %13 : vector<16x128xi32>
    %c0_6 = arith.constant 0 : index
    %c0_7 = arith.constant 0 : index
    %15 = vector.load %arg10[%c0_6, %c0_7] : memref<16x1xf32, #tpu.memory_space<vmem>>, vector<16x1xf32>
    %cst_8 = arith.constant 0.000000e+00 : f32
    %16 = vector.broadcast %cst_8 : f32 to vector<16x128xf32>
    %17 = arith.select %14, %7, %16 : vector<16x128xi1>, vector<16x128xf32>
    %cst_9 = arith.constant dense<0.000000e+00> : vector<16xf32>
    %18 = vector.multi_reduction <add>, %17, %cst_9 [1] : vector<16x128xf32> to vector<16xf32>
    %19 = vector.shape_cast %18 : vector<16xf32> to vector<16x1xf32>
    %20 = arith.addf %15, %19 : vector<16x1xf32>
    %c0_10 = arith.constant 0 : index
    %c0_11 = arith.constant 0 : index
    %21 = vector.load %arg10[%c0_10, %c0_11] : memref<16x1xf32, #tpu.memory_space<vmem>>, vector<16x1xf32>
    tpu.vector_store %arg10[%c0_10, %c0_11], %20 {strides = array<i32>} : memref<16x1xf32, #tpu.memory_space<vmem>>, vector<16x1xf32>,
    %c128_i32_12 = arith.constant 128 : i32
    %22 = arith.muli %1, %c128_i32_12 : i32
    %c16_i32 = arith.constant 16 : i32
    %23 = arith.subi %c16_i32, %22 : i32
    %24 = vector.broadcast %23 : i32 to vector<16x128xi32>
    %25 = arith.cmpi slt, %8, %24 : vector<16x128xi32>
    %cst_13 = arith.constant -1.000000e+30 : f32
    %26 = vector.broadcast %cst_13 : f32 to vector<16x128xf32>
    %27 = arith.select %25, %7, %26 : vector<16x128xi1>, vector<16x128xf32>
    %c0_14 = arith.constant 0 : index
    %c0_15 = arith.constant 0 : index
    %28 = vector.load %arg8[%c0_14, %c0_15] : memref<16x1xf32, #tpu.memory_space<vmem>>, vector<16x1xf32>
    %cst_16 = arith.constant dense<0xFF800000> : vector<16xf32>
    %29 = vector.multi_reduction <maximumf>, %27, %cst_16 [1] : vector<16x128xf32> to vector<16xf32>
    %30 = vector.shape_cast %29 : vector<16xf32> to vector<16x1xf32>
    %31 = arith.maximumf %28, %30 : vector<16x1xf32>
    %32 = arith.subf %28, %31 : vector<16x1xf32>
    %33 = math.exp %32 : vector<16x1xf32>
    %c0_17 = arith.constant 0 : index
    %c0_18 = arith.constant 0 : index
    %34 = vector.load %arg9[%c0_17, %c0_18] : memref<16x1xf32, #tpu.memory_space<vmem>>, vector<16x1xf32>
    %35 = arith.mulf %33, %34 : vector<16x1xf32>
    %36 = vector.broadcast %31 : vector<16x1xf32> to vector<16x128xf32>
    %37 = arith.subf %27, %36 : vector<16x128xf32>
    %38 = math.exp %37 : vector<16x128xf32>
    %cst_19 = arith.constant dense<0.000000e+00> : vector<16xf32>
    %39 = vector.multi_reduction <add>, %38, %cst_19 [1] : vector<16x128xf32> to vector<16xf32>
    %40 = vector.shape_cast %39 : vector<16xf32> to vector<16x1xf32>
    %41 = arith.addf %35, %40 : vector<16x1xf32>
    %c0_20 = arith.constant 0 : index
    %c0_21 = arith.constant 0 : index
    %42 = vector.load %arg9[%c0_20, %c0_21] : memref<16x1xf32, #tpu.memory_space<vmem>>, vector<16x1xf32>
    tpu.vector_store %arg9[%c0_20, %c0_21], %41 {strides = array<i32>} : memref<16x1xf32, #tpu.memory_space<vmem>>, vector<16x1xf32>,
    %c0_22 = arith.constant 0 : index
    %c0_23 = arith.constant 0 : index
    %43 = vector.load %arg8[%c0_22, %c0_23] : memref<16x1xf32, #tpu.memory_space<vmem>>, vector<16x1xf32>
    tpu.vector_store %arg8[%c0_22, %c0_23], %31 {strides = array<i32>} : memref<16x1xf32, #tpu.memory_space<vmem>>, vector<16x1xf32>,
    %c0_i32_24 = arith.constant 0 : i32
    %44 = arith.cmpi eq, %arg2, %c0_i32_24 : i32
    %45 = arith.extui %44 : i1 to i32
    %c0_i32_25 = arith.constant 0 : i32
    %46 = arith.cmpi ne, %45, %c0_i32_25 : i32
    scf.if %46 {
      %c0_26 = arith.constant 0 : index
      %c0_27 = arith.constant 0 : index
      %47 = vector.load %arg8[%c0_26, %c0_27] : memref<16x1xf32, #tpu.memory_space<vmem>>, vector<16x1xf32>
      %c0_28 = arith.constant 0 : index
      %c0_29 = arith.constant 0 : index
      %48 = vector.load %arg9[%c0_28, %c0_29] : memref<16x1xf32, #tpu.memory_space<vmem>>, vector<16x1xf32>
      %49 = math.log %48 : vector<16x1xf32>
      %50 = arith.addf %47, %49 : vector<16x1xf32>
      %51 = vector.shape_cast %50 : vector<16x1xf32> to vector<1x16x1xf32>
      %c0_30 = arith.constant 0 : index
      %c0_31 = arith.constant 0 : index
      %c0_32 = arith.constant 0 : index
      %52 = vector.load %arg6[%c0_30, %c0_31, %c0_32] : memref<1x16x1xf32, #tpu.memory_space<vmem>>, vector<1x16x1xf32>
      tpu.vector_store %arg6[%c0_30, %c0_31, %c0_32], %51 {strides = array<i32>} : memref<1x16x1xf32, #tpu.memory_space<vmem>>, vector<1x16x1xf32>,
      %c0_33 = arith.constant 0 : index
      %c0_34 = arith.constant 0 : index
      %53 = vector.load %arg10[%c0_33, %c0_34] : memref<16x1xf32, #tpu.memory_space<vmem>>, vector<16x1xf32>
      %54 = vector.shape_cast %53 : vector<16x1xf32> to vector<1x16x1xf32>
      %c0_35 = arith.constant 0 : index
      %c0_36 = arith.constant 0 : index
      %c0_37 = arith.constant 0 : index
      %55 = vector.load %arg7[%c0_35, %c0_36, %c0_37] : memref<1x16x1xf32, #tpu.memory_space<vmem>>, vector<1x16x1xf32>
      tpu.vector_store %arg7[%c0_35, %c0_36, %c0_37], %54 {strides = array<i32>} : memref<1x16x1xf32, #tpu.memory_space<vmem>>, vector<1x16x1xf32>,
    } else {
    }
    return
  }
  func.func @transform_0(%arg0: i32, %arg1: i32, %arg2: i32) -> (i32, i32) {
    %c0_i32 = arith.constant 0 : i32
    %c0_i32_0 = arith.constant 0 : i32
    return %arg1, %c0_i32 : i32, i32
  }
  func.func @transform_1(%arg0: i32, %arg1: i32, %arg2: i32) -> (i32, i32) {
    %c1_i32 = arith.constant 1 : i32
    %0 = arith.muli %arg0, %c1_i32 : i32
    %1 = arith.addi %0, %arg2 : i32
    %c0_i32 = arith.constant 0 : i32
    %c0_i32_0 = arith.constant 0 : i32
    return %c0_i32, %1 : i32, i32
  }
  func.func @transform_2(%arg0: i32, %arg1: i32, %arg2: i32) -> (i32, i32) {
    %c0_i32 = arith.constant 0 : i32
    %c0_i32_0 = arith.constant 0 : i32
    return %arg1, %c0_i32 : i32, i32
  }
  func.func @transform_3(%arg0: i32, %arg1: i32, %arg2: i32) -> (i32, i32, i32) {
    %c0_i32 = arith.constant 0 : i32
    %c0_i32_0 = arith.constant 0 : i32
    return %arg0, %arg1, %c0_i32 : i32, i32, i32
  }
  func.func @transform_4(%arg0: i32, %arg1: i32, %arg2: i32) -> (i32, i32, i32) {
    %c0_i32 = arith.constant 0 : i32
    %c0_i32_0 = arith.constant 0 : i32
    return %arg0, %arg1, %c0_i32 : i32, i32, i32
  }
}

</mosaic_0001>

<llo_original>
// kernel: tpu_custom_call.1
$region0: #{tpu_custom_call.1}
  #allocation0 [shape = 'u32[]', space=smem, size = 0x4, offset = 0x4, fixed_abs, tag = 'smem constant byte address 0x4 - core index']
  #allocation1 [shape = 'u32[144,128]{1,0:T(1,128)}', space=vmem, size = 0x12000, scoped, tag = 'internal scratch']
  #allocation2 [shape = 'f32[16,1]{1,0:T(8,128)}', space=vmem, size = 0x2000, scoped, tag = 'scratch operand']
  #allocation3 [shape = 'f32[16,1]{1,0:T(8,128)}', space=vmem, size = 0x2000, scoped, tag = 'scratch operand']
  #allocation4 [shape = 'f32[16,1]{1,0:T(8,128)}', space=vmem, size = 0x2000, scoped, tag = 'scratch operand']
  %s0 = inlined_call_operand.hbm [shape: bf16[16,32], index: 0, kind: input, shape index: {}]
  %s1 = inlined_call_operand.vmem [shape: bf16[32,128], index: 1, kind: input, shape index: {}]
  %s2 = inlined_call_operand.vmem [shape: s32[16,1], index: 2, kind: input, shape index: {}]
  %s3 = inlined_call_operand.vmem [shape: f32[1,16,1], index: 3, kind: output, shape index: {0}]
  %s4 = inlined_call_operand.vmem [shape: f32[1,16,1], index: 4, kind: output, shape index: {1}]
  %5 = xla_tuple %s3, %s4
  %s6 = sld [smem:[#allocation0]]
  $region42: #{tpu_custom_call.1} parent=0
    _
  %s8 = ssub.s32 1, %s6
  %s9 = scalar_select 0, %s8, %s6
  $region1: #{tpu_custom_call.1} parent=0
    #allocation5 [shape = 'u8[4096]{0}', space=vmem, size = 0x1000, scoped, tag = 'input window, operand 0, single buffered']
    #allocation6 [shape = 's32[1]{0}', space=sflag, size = 0x4, scoped, tag = 'scoped memory for tpu_custom_call.1']
    %10 = vsyncpa [#allocation6], 0
    // Predicated region
    $region2: #{tpu_custom_call.1} parent=1 // pred_check
      _
    $region3: #{tpu_custom_call.1} parent=1 // pred_check_branch
      %12 = sbr.rel (0) target = $region5
    $region4: #{tpu_custom_call.1} parent=1 // pred_region
      %s14 = ssub.s32 128, 128
      %15 = vsyncadd [#allocation6], %s14
      %s16 = sshll.u32 [#allocation5], 4
      %s17 = int_to_ptr.vmem [resolvable:$true] %s16
      %22 = dma.hbm_to_vmem [thread:$0]  %s0, 128, %s17, [#allocation6], 64, 64, 4
    $region5: #{tpu_custom_call.1} parent=1 // pred_fallthru
      _
    // Predicated region
    $region6: #{tpu_custom_call.1} parent=1 // pred_check
      _
    $region7: #{tpu_custom_call.1} parent=1 // pred_check_branch
      %24 = sbr.rel (0) target = $region9
    $region8: #{tpu_custom_call.1} parent=1 // pred_region
      %s25 = sadd.s32 0, 0
      %p26 = scmp.lt.s32.totalorder %s25, 0
      %s27 = scalar_select %p26, %s25, 0
      %s28 = smul.addr %s27, 4
      %s29 = scalar_lea.vmem %s1, %s28
      %s30 = sadd.s32 0, 0
    $region9: #{tpu_custom_call.1} parent=1 // pred_fallthru
      _
    // Predicated region
    $region10: #{tpu_custom_call.1} parent=1 // pred_check
      _
    $region11: #{tpu_custom_call.1} parent=1 // pred_check_branch
      %32 = sbr.rel (0) target = $region13
    $region12: #{tpu_custom_call.1} parent=1 // pred_region
      _
    $region13: #{tpu_custom_call.1} parent=1 // pred_fallthru
      _
    // Predicated region
    $region14: #{tpu_custom_call.1} parent=1 // pred_check
      _
    $region15: #{tpu_custom_call.1} parent=1 // pred_check_branch
      %34 = sbr.rel (0) target = $region17
    $region16: #{tpu_custom_call.1} parent=1 // pred_region
      %35 = dma.done [#allocation6], 128
    $region17: #{tpu_custom_call.1} parent=1 // pred_fallthru
      _
    %s36 = sadd.s32 0, 0
    %p37 = scmp.lt.s32.totalorder %s36, 0
    %s38 = scalar_select %p37, %s36, 0
    %s39 = smul.addr %s38, 4
    %s40 = scalar_lea.vmem %s1, %s39
    %s41 = sadd.s32 0, 0
    %p42 = scmp.lt.s32.totalorder %s41, 0
    %s43 = scalar_select %p42, %s41, 0
    %s44 = smul.addr %s43, 4
    %s45 = scalar_lea.vmem %s1, %s44
    %s46 = sadd.s32 0, 0
    %s48 = sadd.s32 0, 0
    %p49 = scmp.eq.s32.totalorder 0, 0
    // Predicated region
    $region18: #{tpu_custom_call.1} parent=1 // pred_check
      %p50 = pneg %p49
    $region19: #{tpu_custom_call.1} parent=1 // pred_check_branch
      %52 = sbr.rel (%p50) target = $region21
    $region20: #{tpu_custom_call.1} parent=1 // pred_region
      %vm53 = vcmask 7168
      %54 = vst.msk [vmem:[#allocation2] sm:$0xff] %vm53, -1e+30
      %55 = vst.msk [vmem:[#allocation2 + $0x8] sm:$0xff] %vm53, -1e+30
      %56 = vst.msk [vmem:[#allocation3] sm:$0xff] %vm53, 0.0
      %57 = vst.msk [vmem:[#allocation3 + $0x8] sm:$0xff] %vm53, 0.0
      %58 = vst.msk [vmem:[#allocation4] sm:$0xff] %vm53, 0.0
      %59 = vst.msk [vmem:[#allocation4 + $0x8] sm:$0xff] %vm53, 0.0
    $region21: #{tpu_custom_call.1} parent=1 // pred_fallthru
      _
    %v60 = vld [vmem:[#allocation5] sm:$0xf]
    %v61 = vld [vmem:[#allocation5 + $0x4] sm:$0xf]
    %v62 = vld [vmem:[%s45] sm:$0xf]
    %v63 = vld [vmem:[%s45 + $0x4] sm:$0xf]
    %v64 = vld [vmem:[%s45 + $0x8] sm:$0xf]
    %v65 = vld [vmem:[%s45 + $0xc] sm:$0xf]
    %v68 = vunpack.c.l.b16 %v60
    %v69 = vunpack.c.l.b16 %v61
    %v70 = vpack.c.b16 %v69, %v68
    %v75 = vunpack.c.l.b16 %v62
    %v76 = vunpack.c.l.b16 %v63
    %v77 = vunpack.c.l.b16 %v64
    %v78 = vunpack.c.l.b16 %v65
    %v79 = vpack.c.b16 %v76, %v75
    %v80 = vpack.c.b16 %v78, %v77
    %vm83 = vcmask 261120
    %v85 = vsel %vm83, %v70, 0
    %87 = vmatprep.subr.bf16.mxu0 0
    %88 = vmatpush1.bf16.msra.mxu0 %v79
    %89 = vmatprep.subr.bf16.mxu0 0
    %90 = vmatpush1.bf16.msra.mxu0 %v80
    %91 = vmatprep.subr.bf16.mxu0 0
    %92 = vmatpush1.bf16.msra.mxu0 0
    %93 = vmatprep.subr.bf16.mxu0 0
    %94 = vmatpush1.bf16.msra.mxu0 0
    %95 = vmatprep.subr.bf16.mxu0 0
    %96 = vmatpush1.bf16.msra.mxu0 0
    %97 = vmatprep.subr.bf16.mxu0 0
    %98 = vmatpush1.bf16.msra.mxu0 0
    %99 = vmatprep.subr.bf16.mxu0 0
    %100 = vmatpush1.bf16.msra.mxu0 0
    %101 = vmatprep.subr.bf16.mxu0 0
    %102 = vmatpush1.bf16.msra.mxu0 0
    %103 = vmatprep.subr.bf16.mxu0 0
    %104 = vmatpush1.bf16.msra.mxu0 0
    %105 = vmatprep.subr.bf16.mxu0 0
    %106 = vmatpush1.bf16.msra.mxu0 0
    %107 = vmatprep.subr.bf16.mxu0 0
    %108 = vmatpush1.bf16.msra.mxu0 0
    %109 = vmatprep.subr.bf16.mxu0 0
    %110 = vmatpush1.bf16.msra.mxu0 0
    %111 = vmatprep.subr.bf16.mxu0 0
    %112 = vmatpush1.bf16.msra.mxu0 0
    %113 = vmatprep.subr.bf16.mxu0 0
    %114 = vmatpush1.bf16.msra.mxu0 0
    %115 = vmatprep.subr.bf16.mxu0 0
    %116 = vmatpush1.bf16.msra.mxu0 0
    %117 = vmatprep.subr.bf16.mxu0 0
    %118 = vmatpush1.bf16.msra.mxu0 0
    %119 = vmatprep.mubr.bf16.mxu0 0
    %120 = vmatmul.mubr.bf16.gmra.mrb[0].mxu0 %v85
    %v121 = vpop.f32.mrb[0].mxu0
    %v122 = vadd.f32 0.0, %v121
    %v123 = vpop.f32.mrb[0].mxu0
    %v124 = vpop.f32.mrb[0].mxu0
    %v125 = vadd.f32 0.0, %v124
    %v126 = vpop.f32.mrb[0].mxu0
    %127 = vdwg.mxu0
    %v128 = vlaneseq
    %v129 = vand.u32 %v128, 127
    %v130 = vld [vmem:[%s2] sm:$0xff]
    %v131 = vld [vmem:[%s2 + $0x8] sm:$0xff]
    %s132 = smul.u32 %s48, 128
    %v133 = vstv %s132
    %v134 = vsub.s32 %v130, %v133
    %v135 = vsub.s32 %v131, %v133
    %136 = vset.pattern.permute.xlu0 0
    %137 = vperm.xlu0 %136, %v134
    %v138 = vpop.permute.xlu0 %137
    %139 = vset.pattern.permute.xlu0 0
    %140 = vperm.xlu0 %139, %v135
    %v141 = vpop.permute.xlu0 %140
    %vm142 = vcmp.eq.s32.totalorder %v129, %v138
    %vm143 = vcmp.eq.s32.totalorder %v129, %v141
    %v144 = vld [vmem:[#allocation4] sm:$0xff]
    %v145 = vld [vmem:[#allocation4 + $0x8] sm:$0xff]
    %v146 = vsel %vm142, %v122, 0.0
    %v147 = vsel %vm143, %v125, 0.0
    %148 = vadd.xlane.f32.xlu0 %v146
    %v149 = vpop.xlane.xlu0 %148
    %150 = vadd.xlane.f32.xlu0 %v147
    %v151 = vpop.xlane.xlu0 %150
    %v152 = vadd.f32 %v144, %v149
    %v153 = vadd.f32 %v145, %v151
    %vm154 = vcmask 7168
    %155 = vst.msk [vmem:[#allocation4] sm:$0xff] %vm154, %v152
    %156 = vst.msk [vmem:[#allocation4 + $0x8] sm:$0xff] %vm154, %v153
    %s157 = ssub.s32 16, %s132
    %v158 = vstv %s157
    %vm159 = vcmp.lt.s32.totalorder %v129, %v158
    %v160 = vsel %vm159, %v122, -1e+30
    %v161 = vsel %vm159, %v125, -1e+30
    %v162 = vld [vmem:[#allocation2] sm:$0xff]
    %v163 = vld [vmem:[#allocation2 + $0x8] sm:$0xff]
    %164 = vmax.xlane.f32.xlu0 %v160
    %v165 = vpop.xlane.xlu0 %164
    %166 = vmax.xlane.f32.xlu0 %v161
    %v167 = vpop.xlane.xlu0 %166
    %v168 = vmax.f32 %v162, %v165
    %v169 = vmax.f32 %v163, %v167
    %v170 = vsub.f32 %v162, %v168
    %v171 = vsub.f32 %v163, %v169
    %v172 = vmul.f32 %v170, 1.442695
    %v173 = vpow.pop %v172
    %v174 = vmul.f32 %v171, 1.442695
    %v175 = vpow.pop %v174
    %v176 = vld [vmem:[#allocation3] sm:$0xff]
    %v177 = vld [vmem:[#allocation3 + $0x8] sm:$0xff]
    %v178 = vmul.f32 %v173, %v176
    %v179 = vmul.f32 %v175, %v177
    %181 = vset.pattern.permute.xlu0 0
    %182 = vperm.xlu0 %181, %v168
    %v183 = vpop.permute.xlu0 %182
    %186 = vset.pattern.permute.xlu0 0
    %187 = vperm.xlu0 %186, %v169
    %v188 = vpop.permute.xlu0 %187
    %v190 = vsub.f32 %v160, %v183
    %v191 = vsub.f32 %v161, %v188
    %v192 = vmul.f32 %v190, 1.442695
    %v193 = vpow.pop %v192
    %v194 = vmul.f32 %v191, 1.442695
    %v195 = vpow.pop %v194
    %196 = vadd.xlane.f32.xlu0 %v193
    %v197 = vpop.xlane.xlu0 %196
    %198 = vadd.xlane.f32.xlu0 %v195
    %v199 = vpop.xlane.xlu0 %198
    %v200 = vadd.f32 %v178, %v197
    %v201 = vadd.f32 %v179, %v199
    %202 = vst.msk [vmem:[#allocation3] sm:$0xff] %vm154, %v200
    %203 = vst.msk [vmem:[#allocation3 + $0x8] sm:$0xff] %vm154, %v201
    %204 = vst.msk [vmem:[#allocation2] sm:$0xff] %vm154, %v168
    %205 = vst.msk [vmem:[#allocation2 + $0x8] sm:$0xff] %vm154, %v169
    // Predicated region
    $region22: #{tpu_custom_call.1} parent=1 // pred_check
      %p206 = pneg %p49
    $region23: #{tpu_custom_call.1} parent=1 // pred_check_branch
      %208 = sbr.rel (%p206) target = $region25
    $region24: #{tpu_custom_call.1} parent=1 // pred_region
      %v209 = vld [vmem:[#allocation2] sm:$0xff]
      %v210 = vld [vmem:[#allocation2 + $0x8] sm:$0xff]
      %v211 = vld [vmem:[#allocation3] sm:$0xff]
      %v212 = vld [vmem:[#allocation3 + $0x8] sm:$0xff]
      %v213 = vlog2.pop %v211
      %v214 = vmul.f32 %v213, 0.6931472
      %v215 = vlog2.pop %v212
      %v216 = vmul.f32 %v215, 0.6931472
      %v217 = vadd.f32 %v209, %v214
      %v218 = vadd.f32 %v210, %v216
      %219 = vst.msk [vmem:[%s3] sm:$0xff] %vm154, %v217
      %220 = vst.msk [vmem:[%s3 + $0x8] sm:$0xff] %vm154, %v218
      %v221 = vld [vmem:[#allocation4] sm:$0xff]
      %v222 = vld [vmem:[#allocation4 + $0x8] sm:$0xff]
      %223 = vst.msk [vmem:[%s4] sm:$0xff] %vm154, %v221
      %224 = vst.msk [vmem:[%s4 + $0x8] sm:$0xff] %vm154, %v222
    $region25: #{tpu_custom_call.1} parent=1 // pred_fallthru
      _
    // Predicated region
    $region26: #{tpu_custom_call.1} parent=1 // pred_check
      _
    $region27: #{tpu_custom_call.1} parent=1 // pred_check_branch
      %226 = sbr.rel (0) target = $region29
    $region28: #{tpu_custom_call.1} parent=1 // pred_region
      _
    $region29: #{tpu_custom_call.1} parent=1 // pred_fallthru
      _
    // Predicated region
    $region30: #{tpu_custom_call.1} parent=1 // pred_check
      _
    $region31: #{tpu_custom_call.1} parent=1 // pred_check_branch
      %228 = sbr.rel (0) target = $region33
    $region32: #{tpu_custom_call.1} parent=1 // pred_region
      _
    $region33: #{tpu_custom_call.1} parent=1 // pred_fallthru
      _
    // Predicated region
    $region34: #{tpu_custom_call.1} parent=1 // pred_check
      _
    $region35: #{tpu_custom_call.1} parent=1 // pred_check_branch
      %230 = sbr.rel (0) target = $region37
    $region36: #{tpu_custom_call.1} parent=1 // pred_region
      _
    $region37: #{tpu_custom_call.1} parent=1 // pred_fallthru
      _
    // Predicated region
    $region38: #{tpu_custom_call.1} parent=1 // pred_check
      _
    $region39: #{tpu_custom_call.1} parent=1 // pred_check_branch
      %232 = sbr.rel (0) target = $region41
    $region40: #{tpu_custom_call.1} parent=1 // pred_region
      _
    $region41: #{tpu_custom_call.1} parent=1 // pred_fallthru
      _
    %233 = vsyncpa [#allocation6], 1

</llo_original>
